<compile_context>
chip_gen: v5e
topology: v5e:2x2
jax: 0.10.0
libtpu: 0.0.40
codegen_flags: <defaults>
</compile_context>

<pallas_src>
import jax
import jax.numpy as jnp
from jax import lax
from jax.experimental import pallas as pl
from jax.experimental.pallas import tpu as pltpu


# ----------------------------------------------------------------------------
# Fused kernel: embedding-gate gather + LSTM recurrence + output projection.
# ----------------------------------------------------------------------------
def fused_lstm_kernel(tok_ref, table_ref, whh_ref, wln_ref, bln_ref, out_ref):
    """
    tok_ref   : (B, T)    int32  SMEM (scalar prefetch)  token ids
    table_ref : (V, 4H)   f32    VMEM   emb @ W_ih^T + (b_ih + b_hh)
    whh_ref   : (H, 4H)   f32    VMEM   recurrent weights (pre-transposed)
    wln_ref   : (H, Pp)   f32    VMEM   output weights, zero-padded to 128 lanes
    bln_ref   : (1, Pp)   f32    VMEM   output bias, zero-padded
    out_ref   : (T*B, Pp) f32    VMEM   time-major flattened logits
    """
    B, T = tok_ref.shape
    H, G = whh_ref.shape                         # G = 4H

    # Load weights/bias ONCE; the loop body closes over the vreg copies.
    whh = whh_ref[...]
    wln = wln_ref[...]
    bln = bln_ref[...]

    def step(t, carry):
        h, c = carry

        # Gate inputs for this step: gather precomputed table rows (depends
        # only on token ids -> off the sequential dependence chain).
        rows = [table_ref[pl.ds(tok_ref[b, t], 1), :] for b in range(B)]
        gx_t = rows[0] if B == 1 else jnp.concatenate(rows, axis=0)   # (B, 4H)

        # Only the recurrent matmul sits on the serial chain.
        gates = gx_t + jnp.dot(h, whh, preferred_element_type=jnp.float32)

        # Full-(B,4H)-vreg nonlinearities (EUP), then static lane slices.
        sig = jax.nn.sigmoid(gates)
        th = jnp.tanh(gates)
        i = sig[:, 0 * H:1 * H]
        f = sig[:, 1 * H:2 * H]
        g = th[:, 2 * H:3 * H]
        o = sig[:, 3 * H:4 * H]
        c_new = f * c + i * g
        h_new = o * jnp.tanh(c_new)

        # Fused output projection (off the chain): lane-dense (B, 128) store.
        logits_t = jnp.dot(h_new, wln, preferred_element_type=jnp.float32) + bln
        row0 = pl.multiple_of(t * B, B)
        out_ref[pl.ds(row0, B), :] = logits_t
        return (h_new, c_new)

    zeros = jnp.zeros((B, H), jnp.float32)
    # T=8 -> full unroll is fine.  For long T use lax.fori_loop(..., unroll=4..8).
    lax.fori_loop(0, T, step, (zeros, zeros), unroll=True)


# ----------------------------------------------------------------------------
# Forward wrapper (parameter-only preprocessing in XLA, one pallas_call).
# ----------------------------------------------------------------------------
def my_lstm_forward(tokens, params):
    """tokens: (B, T) int32.  Returns logits (B, T, posn) float32."""
    emb, w_ih, w_hh, b_ih, b_hh, w_ln, b_ln = (
        params["emb"], params["w_ih"], params["w_hh"],
        params["b_ih"], params["b_hh"], params["w_ln"], params["b_ln"])

    B, T = tokens.shape
    V, H = emb.shape
    P = w_ln.shape[0]
    G = 4 * H                                       # 128 -> lane-aligned gates
    P_pad = pl.cdiv(P, 128) * 128                   # lane-dense output width

    # Parameter-only preprocessing (weight fold; no per-token work in XLA):
    #   gate_table[v] = emb[v] @ W_ih^T + (b_ih + b_hh)
    gate_table = (emb.astype(jnp.float32) @ w_ih.T.astype(jnp.float32)
                  + (b_ih + b_hh).astype(jnp.float32)[None, :])        # (V, 4H)
    whh_t = w_hh.T.astype(jnp.float32)                                  # (H, 4H)
    wln_pad = jnp.pad(w_ln.T.astype(jnp.float32), ((0, 0), (0, P_pad - P)))
    bln_pad = jnp.pad(b_ln.astype(jnp.float32), (0, P_pad - P)).reshape(1, P_pad)

    out_flat = pl.pallas_call(
        fused_lstm_kernel,
        out_shape=jax.ShapeDtypeStruct((T * B, P_pad), jnp.float32),
        grid_spec=pltpu.PrefetchScalarGridSpec(
            num_scalar_prefetch=1,                  # tokens -> SMEM
            grid=(1,),                              # recurrence = in-kernel loop
            in_specs=[
                pl.BlockSpec((V, G), lambda i, tok: (0, 0)),       # gate table
                pl.BlockSpec((H, G), lambda i, tok: (0, 0)),       # W_hh^T
                pl.BlockSpec((H, P_pad), lambda i, tok: (0, 0)),   # W_ln^T (pad)
                pl.BlockSpec((1, P_pad), lambda i, tok: (0, 0)),   # b_ln (pad)
            ],
            out_specs=pl.BlockSpec((T * B, P_pad), lambda i, tok: (0, 0)),
        ),
        # MUST stay sequential: the time dependence lives in the fori_loop carry.
        compiler_params=pltpu.CompilerParams(
            dimension_semantics=("arbitrary",)),
    )(tokens.astype(jnp.int32), gate_table, whh_t, wln_pad, bln_pad)

    # (T*B, P_pad) time-major -> (B, T, P); padding lanes sliced off in XLA.
    logits = out_flat.reshape(T, B, P_pad)[:, :, :P]
    return jnp.transpose(logits, (1, 0, 2))


# ----------------------------------------------------------------------------
# Pure-JAX reference (lax.scan) for correctness check.
# ----------------------------------------------------------------------------
def reference_forward(tokens, params):
    emb, w_ih, w_hh, b_ih, b_hh, w_ln, b_ln = (
        params["emb"], params["w_ih"], params["w_hh"],
        params["b_ih"], params["b_hh"], params["w_ln"], params["b_ln"])
    B, T = tokens.shape
    H = emb.shape[1]
    x = jnp.take(emb, tokens, axis=0)              # (B, T, H)

    def step(carry, x_t):
        h, c = carry
        gates = x_t @ w_ih.T + h @ w_hh.T + b_ih + b_hh
        i = jax.nn.sigmoid(gates[:, 0 * H:1 * H])
        f = jax.nn.sigmoid(gates[:, 1 * H:2 * H])
        g = jnp.tanh(gates[:, 2 * H:3 * H])
        o = jax.nn.sigmoid(gates[:, 3 * H:4 * H])
        c = f * c + i * g
        h = o * jnp.tanh(c)
        return (h, c), h

    h0 = jnp.zeros((B, H), jnp.float32)
    c0 = jnp.zeros((B, H), jnp.float32)
    _, hs = lax.scan(step, (h0, c0), jnp.transpose(x, (1, 0, 2)))
    lo = jnp.transpose(hs, (1, 0, 2))              # (B, T, H)
    return lo @ w_ln.T + b_ln


def init_params(key, vocsize, posn, hdim):
    ks = jax.random.split(key, 7)
    scale = 1.0 / jnp.sqrt(hdim)
    emb = jax.random.normal(ks[0], (vocsize, hdim), jnp.float32) * 0.1
    emb = emb.at[0].set(0.0)                       # padding_idx=0
    return {
        "emb": emb,
        "w_ih": jax.random.uniform(ks[1], (4 * hdim, hdim), jnp.float32, -scale, scale),
        "w_hh": jax.random.uniform(ks[2], (4 * hdim, hdim), jnp.float32, -scale, scale),
        "b_ih": jax.random.uniform(ks[3], (4 * hdim,), jnp.float32, -scale, scale),
        "b_hh": jax.random.uniform(ks[4], (4 * hdim,), jnp.float32, -scale, scale),
        "w_ln": jax.random.uniform(ks[5], (posn, hdim), jnp.float32, -scale, scale),
        "b_ln": jax.random.uniform(ks[6], (posn,), jnp.float32, -scale, scale),
    }


if __name__ == "__main__":
    VOCSIZE, POSN, HDIM = 50, 16, 32
    B, T = 2, 8

    key = jax.random.PRNGKey(0)
    k_par, k_tok = jax.random.split(key)
    params = init_params(k_par, VOCSIZE, POSN, HDIM)
    tokens = jax.random.randint(k_tok, (B, T), 0, VOCSIZE, dtype=jnp.int32)

    fwd = jax.jit(my_lstm_forward)
    out = jax.block_until_ready(fwd(tokens, params))
    ref = jax.block_until_ready(reference_forward(tokens, params))

    assert out.shape == (B, T, POSN), out.shape
    max_err = float(jnp.max(jnp.abs(out - ref)))
    assert jnp.allclose(out, ref, atol=1e-4, rtol=1e-4), max_err
    print("KERNEL_OK")
</pallas_src>

<mosaic_0001>
module attributes {stable_mosaic.version = 11 : i64} {
  func.func @fused_lstm_kernel(%arg0: i32, %arg1: memref<2x8xi32, #tpu.memory_space<smem>>, %arg2: memref<50x128xf32, #tpu.memory_space<vmem>>, %arg3: memref<32x128xf32, #tpu.memory_space<vmem>>, %arg4: memref<32x128xf32, #tpu.memory_space<vmem>>, %arg5: memref<1x128xf32, #tpu.memory_space<vmem>>, %arg6: memref<16x128xf32, #tpu.memory_space<vmem>>) attributes {dimension_semantics = [#tpu.dimension_semantics<arbitrary>], iteration_bounds = array<i64: 1>, scalar_prefetch = 1 : i64, scratch_operands = 0 : i64, tpu.core_type = #tpu.core_type<tc>, window_params = [{pipeline_mode = #tpu.pipeline_mode<synchronous>, transform_indices = @transform_0, window_bounds = array<i64: 50, 128>}, {pipeline_mode = #tpu.pipeline_mode<synchronous>, transform_indices = @transform_1, window_bounds = array<i64: 32, 128>}, {pipeline_mode = #tpu.pipeline_mode<synchronous>, transform_indices = @transform_2, window_bounds = array<i64: 32, 128>}, {pipeline_mode = #tpu.pipeline_mode<synchronous>, transform_indices = @transform_3, window_bounds = array<i64: 1, 128>}, {pipeline_mode = #tpu.pipeline_mode<synchronous>, transform_indices = @transform_4, window_bounds = array<i64: 16, 128>}]} {
    %c0 = arith.constant 0 : index
    %c0_0 = arith.constant 0 : index
    %0 = vector.load %arg3[%c0, %c0_0] : memref<32x128xf32, #tpu.memory_space<vmem>>, vector<32x128xf32>
    %c0_1 = arith.constant 0 : index
    %c0_2 = arith.constant 0 : index
    %1 = vector.load %arg4[%c0_1, %c0_2] : memref<32x128xf32, #tpu.memory_space<vmem>>, vector<32x128xf32>
    %c0_3 = arith.constant 0 : index
    %c0_4 = arith.constant 0 : index
    %2 = vector.load %arg5[%c0_3, %c0_4] : memref<1x128xf32, #tpu.memory_space<vmem>>, vector<1x128xf32>
    %cst = arith.constant 0.000000e+00 : f32
    %3 = vector.broadcast %cst : f32 to vector<2x32xf32>
    %c0_i32 = arith.constant 0 : i32
    %c0_5 = arith.constant 0 : index
    %4 = arith.index_cast %c0_i32 : i32 to index
    %5 = memref.load %arg1[%c0_5, %4] : memref<2x8xi32, #tpu.memory_space<smem>>
    %6 = arith.index_cast %5 : i32 to index
    %c0_6 = arith.constant 0 : index
    %7 = vector.load %arg2[%6, %c0_6] : memref<50x128xf32, #tpu.memory_space<vmem>>, vector<1x128xf32>
    %c1 = arith.constant 1 : index
    %8 = arith.index_cast %c0_i32 : i32 to index
    %9 = memref.load %arg1[%c1, %8] : memref<2x8xi32, #tpu.memory_space<smem>>
    %10 = arith.index_cast %9 : i32 to index
    %c0_7 = arith.constant 0 : index
    %11 = vector.load %arg2[%10, %c0_7] : memref<50x128xf32, #tpu.memory_space<vmem>>, vector<1x128xf32>
    %12 = tpu.concatenate %7, %11 in 0 : vector<1x128xf32>, vector<1x128xf32> -> vector<2x128xf32>
    %cst_8 = arith.constant dense<0.000000e+00> : vector<2x128xf32>
    %13 = tpu.matmul %3, %0, %cst_8 {dimension_numbers = #tpu.dot_dimension_numbers<[1], [0], [0], [1], [0, 0, 1, 1], [], []>} : vector<2x32xf32>, vector<32x128xf32>, vector<2x128xf32> -> vector<2x128xf32>
    %14 = arith.addf %12, %13 : vector<2x128xf32>
    %15 = arith.negf %14 : vector<2x128xf32>
    %16 = math.exp %15 : vector<2x128xf32>
    %cst_9 = arith.constant 1.000000e+00 : f32
    %17 = vector.broadcast %cst_9 : f32 to vector<2x128xf32>
    %18 = arith.addf %17, %16 : vector<2x128xf32>
    %19 = arith.divf %17, %18 : vector<2x128xf32>
    %20 = math.tanh %14 : vector<2x128xf32>
    %21 = vector.extract_strided_slice %19 {offsets = [0, 0], sizes = [2, 32], strides = [1, 1]} : vector<2x128xf32> to vector<2x32xf32>
    %22 = vector.extract_strided_slice %19 {offsets = [0, 32], sizes = [2, 32], strides = [1, 1]} : vector<2x128xf32> to vector<2x32xf32>
    %23 = vector.extract_strided_slice %20 {offsets = [0, 64], sizes = [2, 32], strides = [1, 1]} : vector<2x128xf32> to vector<2x32xf32>
    %24 = vector.extract_strided_slice %19 {offsets = [0, 96], sizes = [2, 32], strides = [1, 1]} : vector<2x128xf32> to vector<2x32xf32>
    %25 = arith.mulf %22, %3 : vector<2x32xf32>
    %26 = arith.mulf %21, %23 : vector<2x32xf32>
    %27 = arith.addf %25, %26 : vector<2x32xf32>
    %28 = math.tanh %27 : vector<2x32xf32>
    %29 = arith.mulf %24, %28 : vector<2x32xf32>
    %cst_10 = arith.constant dense<0.000000e+00> : vector<2x128xf32>
    %30 = tpu.matmul %29, %1, %cst_10 {dimension_numbers = #tpu.dot_dimension_numbers<[1], [0], [0], [1], [0, 0, 1, 1], [], []>} : vector<2x32xf32>, vector<32x128xf32>, vector<2x128xf32> -> vector<2x128xf32>
    %31 = vector.broadcast %2 : vector<1x128xf32> to vector<2x128xf32>
    %32 = arith.addf %30, %31 : vector<2x128xf32>
    %c2_i32 = arith.constant 2 : i32
    %33 = arith.muli %c0_i32, %c2_i32 : i32
    %34 = tpu.assume_multiple %33, 2 : i32
    %35 = arith.index_cast %34 : i32 to index
    %c0_11 = arith.constant 0 : index
    %36 = vector.load %arg6[%35, %c0_11] : memref<16x128xf32, #tpu.memory_space<vmem>>, vector<2x128xf32>
    tpu.vector_store %arg6[%35, %c0_11], %32 {strides = array<i32>} : memref<16x128xf32, #tpu.memory_space<vmem>>, vector<2x128xf32>,
    %c1_i32 = arith.constant 1 : i32
    %c0_12 = arith.constant 0 : index
    %37 = arith.index_cast %c1_i32 : i32 to index
    %38 = memref.load %arg1[%c0_12, %37] : memref<2x8xi32, #tpu.memory_space<smem>>
    %39 = arith.index_cast %38 : i32 to index
    %c0_13 = arith.constant 0 : index
    %40 = vector.load %arg2[%39, %c0_13] : memref<50x128xf32, #tpu.memory_space<vmem>>, vector<1x128xf32>
    %c1_14 = arith.constant 1 : index
    %41 = arith.index_cast %c1_i32 : i32 to index
    %42 = memref.load %arg1[%c1_14, %41] : memref<2x8xi32, #tpu.memory_space<smem>>
    %43 = arith.index_cast %42 : i32 to index
    %c0_15 = arith.constant 0 : index
    %44 = vector.load %arg2[%43, %c0_15] : memref<50x128xf32, #tpu.memory_space<vmem>>, vector<1x128xf32>
    %45 = tpu.concatenate %40, %44 in 0 : vector<1x128xf32>, vector<1x128xf32> -> vector<2x128xf32>
    %cst_16 = arith.constant dense<0.000000e+00> : vector<2x128xf32>
    %46 = tpu.matmul %29, %0, %cst_16 {dimension_numbers = #tpu.dot_dimension_numbers<[1], [0], [0], [1], [0, 0, 1, 1], [], []>} : vector<2x32xf32>, vector<32x128xf32>, vector<2x128xf32> -> vector<2x128xf32>
    %47 = arith.addf %45, %46 : vector<2x128xf32>
    %48 = arith.negf %47 : vector<2x128xf32>
    %49 = math.exp %48 : vector<2x128xf32>
    %cst_17 = arith.constant 1.000000e+00 : f32
    %50 = vector.broadcast %cst_17 : f32 to vector<2x128xf32>
    %51 = arith.addf %50, %49 : vector<2x128xf32>
    %52 = arith.divf %50, %51 : vector<2x128xf32>
    %53 = math.tanh %47 : vector<2x128xf32>
    %54 = vector.extract_strided_slice %52 {offsets = [0, 0], sizes = [2, 32], strides = [1, 1]} : vector<2x128xf32> to vector<2x32xf32>
    %55 = vector.extract_strided_slice %52 {offsets = [0, 32], sizes = [2, 32], strides = [1, 1]} : vector<2x128xf32> to vector<2x32xf32>
    %56 = vector.extract_strided_slice %53 {offsets = [0, 64], sizes = [2, 32], strides = [1, 1]} : vector<2x128xf32> to vector<2x32xf32>
    %57 = vector.extract_strided_slice %52 {offsets = [0, 96], sizes = [2, 32], strides = [1, 1]} : vector<2x128xf32> to vector<2x32xf32>
    %58 = arith.mulf %55, %27 : vector<2x32xf32>
    %59 = arith.mulf %54, %56 : vector<2x32xf32>
    %60 = arith.addf %58, %59 : vector<2x32xf32>
    %61 = math.tanh %60 : vector<2x32xf32>
    %62 = arith.mulf %57, %61 : vector<2x32xf32>
    %cst_18 = arith.constant dense<0.000000e+00> : vector<2x128xf32>
    %63 = tpu.matmul %62, %1, %cst_18 {dimension_numbers = #tpu.dot_dimension_numbers<[1], [0], [0], [1], [0, 0, 1, 1], [], []>} : vector<2x32xf32>, vector<32x128xf32>, vector<2x128xf32> -> vector<2x128xf32>
    %64 = vector.broadcast %2 : vector<1x128xf32> to vector<2x128xf32>
    %65 = arith.addf %63, %64 : vector<2x128xf32>
    %c2_i32_19 = arith.constant 2 : i32
    %66 = arith.muli %c1_i32, %c2_i32_19 : i32
    %67 = tpu.assume_multiple %66, 2 : i32
    %68 = arith.index_cast %67 : i32 to index
    %c0_20 = arith.constant 0 : index
    %69 = vector.load %arg6[%68, %c0_20] : memref<16x128xf32, #tpu.memory_space<vmem>>, vector<2x128xf32>
    tpu.vector_store %arg6[%68, %c0_20], %65 {strides = array<i32>} : memref<16x128xf32, #tpu.memory_space<vmem>>, vector<2x128xf32>,
    %c2_i32_21 = arith.constant 2 : i32
    %c0_22 = arith.constant 0 : index
    %70 = arith.index_cast %c2_i32_21 : i32 to index
    %71 = memref.load %arg1[%c0_22, %70] : memref<2x8xi32, #tpu.memory_space<smem>>
    %72 = arith.index_cast %71 : i32 to index
    %c0_23 = arith.constant 0 : index
    %73 = vector.load %arg2[%72, %c0_23] : memref<50x128xf32, #tpu.memory_space<vmem>>, vector<1x128xf32>
    %c1_24 = arith.constant 1 : index
    %74 = arith.index_cast %c2_i32_21 : i32 to index
    %75 = memref.load %arg1[%c1_24, %74] : memref<2x8xi32, #tpu.memory_space<smem>>
    %76 = arith.index_cast %75 : i32 to index
    %c0_25 = arith.constant 0 : index
    %77 = vector.load %arg2[%76, %c0_25] : memref<50x128xf32, #tpu.memory_space<vmem>>, vector<1x128xf32>
    %78 = tpu.concatenate %73, %77 in 0 : vector<1x128xf32>, vector<1x128xf32> -> vector<2x128xf32>
    %cst_26 = arith.constant dense<0.000000e+00> : vector<2x128xf32>
    %79 = tpu.matmul %62, %0, %cst_26 {dimension_numbers = #tpu.dot_dimension_numbers<[1], [0], [0], [1], [0, 0, 1, 1], [], []>} : vector<2x32xf32>, vector<32x128xf32>, vector<2x128xf32> -> vector<2x128xf32>
    %80 = arith.addf %78, %79 : vector<2x128xf32>
    %81 = arith.negf %80 : vector<2x128xf32>
    %82 = math.exp %81 : vector<2x128xf32>
    %cst_27 = arith.constant 1.000000e+00 : f32
    %83 = vector.broadcast %cst_27 : f32 to vector<2x128xf32>
    %84 = arith.addf %83, %82 : vector<2x128xf32>
    %85 = arith.divf %83, %84 : vector<2x128xf32>
    %86 = math.tanh %80 : vector<2x128xf32>
    %87 = vector.extract_strided_slice %85 {offsets = [0, 0], sizes = [2, 32], strides = [1, 1]} : vector<2x128xf32> to vector<2x32xf32>
    %88 = vector.extract_strided_slice %85 {offsets = [0, 32], sizes = [2, 32], strides = [1, 1]} : vector<2x128xf32> to vector<2x32xf32>
    %89 = vector.extract_strided_slice %86 {offsets = [0, 64], sizes = [2, 32], strides = [1, 1]} : vector<2x128xf32> to vector<2x32xf32>
    %90 = vector.extract_strided_slice %85 {offsets = [0, 96], sizes = [2, 32], strides = [1, 1]} : vector<2x128xf32> to vector<2x32xf32>
    %91 = arith.mulf %88, %60 : vector<2x32xf32>
    %92 = arith.mulf %87, %89 : vector<2x32xf32>
    %93 = arith.addf %91, %92 : vector<2x32xf32>
    %94 = math.tanh %93 : vector<2x32xf32>
    %95 = arith.mulf %90, %94 : vector<2x32xf32>
    %cst_28 = arith.constant dense<0.000000e+00> : vector<2x128xf32>
    %96 = tpu.matmul %95, %1, %cst_28 {dimension_numbers = #tpu.dot_dimension_numbers<[1], [0], [0], [1], [0, 0, 1, 1], [], []>} : vector<2x32xf32>, vector<32x128xf32>, vector<2x128xf32> -> vector<2x128xf32>
    %97 = vector.broadcast %2 : vector<1x128xf32> to vector<2x128xf32>
    %98 = arith.addf %96, %97 : vector<2x128xf32>
    %c2_i32_29 = arith.constant 2 : i32
    %99 = arith.muli %c2_i32_21, %c2_i32_29 : i32
    %100 = tpu.assume_multiple %99, 2 : i32
    %101 = arith.index_cast %100 : i32 to index
    %c0_30 = arith.constant 0 : index
    %102 = vector.load %arg6[%101, %c0_30] : memref<16x128xf32, #tpu.memory_space<vmem>>, vector<2x128xf32>
    tpu.vector_store %arg6[%101, %c0_30], %98 {strides = array<i32>} : memref<16x128xf32, #tpu.memory_space<vmem>>, vector<2x128xf32>,
    %c3_i32 = arith.constant 3 : i32
    %c0_31 = arith.constant 0 : index
    %103 = arith.index_cast %c3_i32 : i32 to index
    %104 = memref.load %arg1[%c0_31, %103] : memref<2x8xi32, #tpu.memory_space<smem>>
    %105 = arith.index_cast %104 : i32 to index
    %c0_32 = arith.constant 0 : index
    %106 = vector.load %arg2[%105, %c0_32] : memref<50x128xf32, #tpu.memory_space<vmem>>, vector<1x128xf32>
    %c1_33 = arith.constant 1 : index
    %107 = arith.index_cast %c3_i32 : i32 to index
    %108 = memref.load %arg1[%c1_33, %107] : memref<2x8xi32, #tpu.memory_space<smem>>
    %109 = arith.index_cast %108 : i32 to index
    %c0_34 = arith.constant 0 : index
    %110 = vector.load %arg2[%109, %c0_34] : memref<50x128xf32, #tpu.memory_space<vmem>>, vector<1x128xf32>
    %111 = tpu.concatenate %106, %110 in 0 : vector<1x128xf32>, vector<1x128xf32> -> vector<2x128xf32>
    %cst_35 = arith.constant dense<0.000000e+00> : vector<2x128xf32>
    %112 = tpu.matmul %95, %0, %cst_35 {dimension_numbers = #tpu.dot_dimension_numbers<[1], [0], [0], [1], [0, 0, 1, 1], [], []>} : vector<2x32xf32>, vector<32x128xf32>, vector<2x128xf32> -> vector<2x128xf32>
    %113 = arith.addf %111, %112 : vector<2x128xf32>
    %114 = arith.negf %113 : vector<2x128xf32>
    %115 = math.exp %114 : vector<2x128xf32>
    %cst_36 = arith.constant 1.000000e+00 : f32
    %116 = vector.broadcast %cst_36 : f32 to vector<2x128xf32>
    %117 = arith.addf %116, %115 : vector<2x128xf32>
    %118 = arith.divf %116, %117 : vector<2x128xf32>
    %119 = math.tanh %113 : vector<2x128xf32>
    %120 = vector.extract_strided_slice %118 {offsets = [0, 0], sizes = [2, 32], strides = [1, 1]} : vector<2x128xf32> to vector<2x32xf32>
    %121 = vector.extract_strided_slice %118 {offsets = [0, 32], sizes = [2, 32], strides = [1, 1]} : vector<2x128xf32> to vector<2x32xf32>
    %122 = vector.extract_strided_slice %119 {offsets = [0, 64], sizes = [2, 32], strides = [1, 1]} : vector<2x128xf32> to vector<2x32xf32>
    %123 = vector.extract_strided_slice %118 {offsets = [0, 96], sizes = [2, 32], strides = [1, 1]} : vector<2x128xf32> to vector<2x32xf32>
    %124 = arith.mulf %121, %93 : vector<2x32xf32>
    %125 = arith.mulf %120, %122 : vector<2x32xf32>
    %126 = arith.addf %124, %125 : vector<2x32xf32>
    %127 = math.tanh %126 : vector<2x32xf32>
    %128 = arith.mulf %123, %127 : vector<2x32xf32>
    %cst_37 = arith.constant dense<0.000000e+00> : vector<2x128xf32>
    %129 = tpu.matmul %128, %1, %cst_37 {dimension_numbers = #tpu.dot_dimension_numbers<[1], [0], [0], [1], [0, 0, 1, 1], [], []>} : vector<2x32xf32>, vector<32x128xf32>, vector<2x128xf32> -> vector<2x128xf32>
    %130 = vector.broadcast %2 : vector<1x128xf32> to vector<2x128xf32>
    %131 = arith.addf %129, %130 : vector<2x128xf32>
    %c2_i32_38 = arith.constant 2 : i32
    %132 = arith.muli %c3_i32, %c2_i32_38 : i32
    %133 = tpu.assume_multiple %132, 2 : i32
    %134 = arith.index_cast %133 : i32 to index
    %c0_39 = arith.constant 0 : index
    %135 = vector.load %arg6[%134, %c0_39] : memref<16x128xf32, #tpu.memory_space<vmem>>, vector<2x128xf32>
    tpu.vector_store %arg6[%134, %c0_39], %131 {strides = array<i32>} : memref<16x128xf32, #tpu.memory_space<vmem>>, vector<2x128xf32>,
    %c4_i32 = arith.constant 4 : i32
    %c0_40 = arith.constant 0 : index
    %136 = arith.index_cast %c4_i32 : i32 to index
    %137 = memref.load %arg1[%c0_40, %136] : memref<2x8xi32, #tpu.memory_space<smem>>
    %138 = arith.index_cast %137 : i32 to index
    %c0_41 = arith.constant 0 : index
    %139 = vector.load %arg2[%138, %c0_41] : memref<50x128xf32, #tpu.memory_space<vmem>>, vector<1x128xf32>
    %c1_42 = arith.constant 1 : index
    %140 = arith.index_cast %c4_i32 : i32 to index
    %141 = memref.load %arg1[%c1_42, %140] : memref<2x8xi32, #tpu.memory_space<smem>>
    %142 = arith.index_cast %141 : i32 to index
    %c0_43 = arith.constant 0 : index
    %143 = vector.load %arg2[%142, %c0_43] : memref<50x128xf32, #tpu.memory_space<vmem>>, vector<1x128xf32>
    %144 = tpu.concatenate %139, %143 in 0 : vector<1x128xf32>, vector<1x128xf32> -> vector<2x128xf32>
    %cst_44 = arith.constant dense<0.000000e+00> : vector<2x128xf32>
    %145 = tpu.matmul %128, %0, %cst_44 {dimension_numbers = #tpu.dot_dimension_numbers<[1], [0], [0], [1], [0, 0, 1, 1], [], []>} : vector<2x32xf32>, vector<32x128xf32>, vector<2x128xf32> -> vector<2x128xf32>
    %146 = arith.addf %144, %145 : vector<2x128xf32>
    %147 = arith.negf %146 : vector<2x128xf32>
    %148 = math.exp %147 : vector<2x128xf32>
    %cst_45 = arith.constant 1.000000e+00 : f32
    %149 = vector.broadcast %cst_45 : f32 to vector<2x128xf32>
    %150 = arith.addf %149, %148 : vector<2x128xf32>
    %151 = arith.divf %149, %150 : vector<2x128xf32>
    %152 = math.tanh %146 : vector<2x128xf32>
    %153 = vector.extract_strided_slice %151 {offsets = [0, 0], sizes = [2, 32], strides = [1, 1]} : vector<2x128xf32> to vector<2x32xf32>
    %154 = vector.extract_strided_slice %151 {offsets = [0, 32], sizes = [2, 32], strides = [1, 1]} : vector<2x128xf32> to vector<2x32xf32>
    %155 = vector.extract_strided_slice %152 {offsets = [0, 64], sizes = [2, 32], strides = [1, 1]} : vector<2x128xf32> to vector<2x32xf32>
    %156 = vector.extract_strided_slice %151 {offsets = [0, 96], sizes = [2, 32], strides = [1, 1]} : vector<2x128xf32> to vector<2x32xf32>
    %157 = arith.mulf %154, %126 : vector<2x32xf32>
    %158 = arith.mulf %153, %155 : vector<2x32xf32>
    %159 = arith.addf %157, %158 : vector<2x32xf32>
    %160 = math.tanh %159 : vector<2x32xf32>
    %161 = arith.mulf %156, %160 : vector<2x32xf32>
    %cst_46 = arith.constant dense<0.000000e+00> : vector<2x128xf32>
    %162 = tpu.matmul %161, %1, %cst_46 {dimension_numbers = #tpu.dot_dimension_numbers<[1], [0], [0], [1], [0, 0, 1, 1], [], []>} : vector<2x32xf32>, vector<32x128xf32>, vector<2x128xf32> -> vector<2x128xf32>
    %163 = vector.broadcast %2 : vector<1x128xf32> to vector<2x128xf32>
    %164 = arith.addf %162, %163 : vector<2x128xf32>
    %c2_i32_47 = arith.constant 2 : i32
    %165 = arith.muli %c4_i32, %c2_i32_47 : i32
    %166 = tpu.assume_multiple %165, 2 : i32
    %167 = arith.index_cast %166 : i32 to index
    %c0_48 = arith.constant 0 : index
    %168 = vector.load %arg6[%167, %c0_48] : memref<16x128xf32, #tpu.memory_space<vmem>>, vector<2x128xf32>
    tpu.vector_store %arg6[%167, %c0_48], %164 {strides = array<i32>} : memref<16x128xf32, #tpu.memory_space<vmem>>, vector<2x128xf32>,
    %c5_i32 = arith.constant 5 : i32
    %c0_49 = arith.constant 0 : index
    %169 = arith.index_cast %c5_i32 : i32 to index
    %170 = memref.load %arg1[%c0_49, %169] : memref<2x8xi32, #tpu.memory_space<smem>>
    %171 = arith.index_cast %170 : i32 to index
    %c0_50 = arith.constant 0 : index
    %172 = vector.load %arg2[%171, %c0_50] : memref<50x128xf32, #tpu.memory_space<vmem>>, vector<1x128xf32>
    %c1_51 = arith.constant 1 : index
    %173 = arith.index_cast %c5_i32 : i32 to index
    %174 = memref.load %arg1[%c1_51, %173] : memref<2x8xi32, #tpu.memory_space<smem>>
    %175 = arith.index_cast %174 : i32 to index
    %c0_52 = arith.constant 0 : index
    %176 = vector.load %arg2[%175, %c0_52] : memref<50x128xf32, #tpu.memory_space<vmem>>, vector<1x128xf32>
    %177 = tpu.concatenate %172, %176 in 0 : vector<1x128xf32>, vector<1x128xf32> -> vector<2x128xf32>
    %cst_53 = arith.constant dense<0.000000e+00> : vector<2x128xf32>
    %178 = tpu.matmul %161, %0, %cst_53 {dimension_numbers = #tpu.dot_dimension_numbers<[1], [0], [0], [1], [0, 0, 1, 1], [], []>} : vector<2x32xf32>, vector<32x128xf32>, vector<2x128xf32> -> vector<2x128xf32>
    %179 = arith.addf %177, %178 : vector<2x128xf32>
    %180 = arith.negf %179 : vector<2x128xf32>
    %181 = math.exp %180 : vector<2x128xf32>
    %cst_54 = arith.constant 1.000000e+00 : f32
    %182 = vector.broadcast %cst_54 : f32 to vector<2x128xf32>
    %183 = arith.addf %182, %181 : vector<2x128xf32>
    %184 = arith.divf %182, %183 : vector<2x128xf32>
    %185 = math.tanh %179 : vector<2x128xf32>
    %186 = vector.extract_strided_slice %184 {offsets = [0, 0], sizes = [2, 32], strides = [1, 1]} : vector<2x128xf32> to vector<2x32xf32>
    %187 = vector.extract_strided_slice %184 {offsets = [0, 32], sizes = [2, 32], strides = [1, 1]} : vector<2x128xf32> to vector<2x32xf32>
    %188 = vector.extract_strided_slice %185 {offsets = [0, 64], sizes = [2, 32], strides = [1, 1]} : vector<2x128xf32> to vector<2x32xf32>
    %189 = vector.extract_strided_slice %184 {offsets = [0, 96], sizes = [2, 32], strides = [1, 1]} : vector<2x128xf32> to vector<2x32xf32>
    %190 = arith.mulf %187, %159 : vector<2x32xf32>
    %191 = arith.mulf %186, %188 : vector<2x32xf32>
    %192 = arith.addf %190, %191 : vector<2x32xf32>
    %193 = math.tanh %192 : vector<2x32xf32>
    %194 = arith.mulf %189, %193 : vector<2x32xf32>
    %cst_55 = arith.constant dense<0.000000e+00> : vector<2x128xf32>
    %195 = tpu.matmul %194, %1, %cst_55 {dimension_numbers = #tpu.dot_dimension_numbers<[1], [0], [0], [1], [0, 0, 1, 1], [], []>} : vector<2x32xf32>, vector<32x128xf32>, vector<2x128xf32> -> vector<2x128xf32>
    %196 = vector.broadcast %2 : vector<1x128xf32> to vector<2x128xf32>
    %197 = arith.addf %195, %196 : vector<2x128xf32>
    %c2_i32_56 = arith.constant 2 : i32
    %198 = arith.muli %c5_i32, %c2_i32_56 : i32
    %199 = tpu.assume_multiple %198, 2 : i32
    %200 = arith.index_cast %199 : i32 to index
    %c0_57 = arith.constant 0 : index
    %201 = vector.load %arg6[%200, %c0_57] : memref<16x128xf32, #tpu.memory_space<vmem>>, vector<2x128xf32>
    tpu.vector_store %arg6[%200, %c0_57], %197 {strides = array<i32>} : memref<16x128xf32, #tpu.memory_space<vmem>>, vector<2x128xf32>,
    %c6_i32 = arith.constant 6 : i32
    %c0_58 = arith.constant 0 : index
    %202 = arith.index_cast %c6_i32 : i32 to index
    %203 = memref.load %arg1[%c0_58, %202] : memref<2x8xi32, #tpu.memory_space<smem>>
    %204 = arith.index_cast %203 : i32 to index
    %c0_59 = arith.constant 0 : index
    %205 = vector.load %arg2[%204, %c0_59] : memref<50x128xf32, #tpu.memory_space<vmem>>, vector<1x128xf32>
    %c1_60 = arith.constant 1 : index
    %206 = arith.index_cast %c6_i32 : i32 to index
    %207 = memref.load %arg1[%c1_60, %206] : memref<2x8xi32, #tpu.memory_space<smem>>
    %208 = arith.index_cast %207 : i32 to index
    %c0_61 = arith.constant 0 : index
    %209 = vector.load %arg2[%208, %c0_61] : memref<50x128xf32, #tpu.memory_space<vmem>>, vector<1x128xf32>
    %210 = tpu.concatenate %205, %209 in 0 : vector<1x128xf32>, vector<1x128xf32> -> vector<2x128xf32>
    %cst_62 = arith.constant dense<0.000000e+00> : vector<2x128xf32>
    %211 = tpu.matmul %194, %0, %cst_62 {dimension_numbers = #tpu.dot_dimension_numbers<[1], [0], [0], [1], [0, 0, 1, 1], [], []>} : vector<2x32xf32>, vector<32x128xf32>, vector<2x128xf32> -> vector<2x128xf32>
    %212 = arith.addf %210, %211 : vector<2x128xf32>
    %213 = arith.negf %212 : vector<2x128xf32>
    %214 = math.exp %213 : vector<2x128xf32>
    %cst_63 = arith.constant 1.000000e+00 : f32
    %215 = vector.broadcast %cst_63 : f32 to vector<2x128xf32>
    %216 = arith.addf %215, %214 : vector<2x128xf32>
    %217 = arith.divf %215, %216 : vector<2x128xf32>
    %218 = math.tanh %212 : vector<2x128xf32>
    %219 = vector.extract_strided_slice %217 {offsets = [0, 0], sizes = [2, 32], strides = [1, 1]} : vector<2x128xf32> to vector<2x32xf32>
    %220 = vector.extract_strided_slice %217 {offsets = [0, 32], sizes = [2, 32], strides = [1, 1]} : vector<2x128xf32> to vector<2x32xf32>
    %221 = vector.extract_strided_slice %218 {offsets = [0, 64], sizes = [2, 32], strides = [1, 1]} : vector<2x128xf32> to vector<2x32xf32>
    %222 = vector.extract_strided_slice %217 {offsets = [0, 96], sizes = [2, 32], strides = [1, 1]} : vector<2x128xf32> to vector<2x32xf32>
    %223 = arith.mulf %220, %192 : vector<2x32xf32>
    %224 = arith.mulf %219, %221 : vector<2x32xf32>
    %225 = arith.addf %223, %224 : vector<2x32xf32>
    %226 = math.tanh %225 : vector<2x32xf32>
    %227 = arith.mulf %222, %226 : vector<2x32xf32>
    %cst_64 = arith.constant dense<0.000000e+00> : vector<2x128xf32>
    %228 = tpu.matmul %227, %1, %cst_64 {dimension_numbers = #tpu.dot_dimension_numbers<[1], [0], [0], [1], [0, 0, 1, 1], [], []>} : vector<2x32xf32>, vector<32x128xf32>, vector<2x128xf32> -> vector<2x128xf32>
    %229 = vector.broadcast %2 : vector<1x128xf32> to vector<2x128xf32>
    %230 = arith.addf %228, %229 : vector<2x128xf32>
    %c2_i32_65 = arith.constant 2 : i32
    %231 = arith.muli %c6_i32, %c2_i32_65 : i32
    %232 = tpu.assume_multiple %231, 2 : i32
    %233 = arith.index_cast %232 : i32 to index
    %c0_66 = arith.constant 0 : index
    %234 = vector.load %arg6[%233, %c0_66] : memref<16x128xf32, #tpu.memory_space<vmem>>, vector<2x128xf32>
    tpu.vector_store %arg6[%233, %c0_66], %230 {strides = array<i32>} : memref<16x128xf32, #tpu.memory_space<vmem>>, vector<2x128xf32>,
    %c7_i32 = arith.constant 7 : i32
    %c0_67 = arith.constant 0 : index
    %235 = arith.index_cast %c7_i32 : i32 to index
    %236 = memref.load %arg1[%c0_67, %235] : memref<2x8xi32, #tpu.memory_space<smem>>
    %237 = arith.index_cast %236 : i32 to index
    %c0_68 = arith.constant 0 : index
    %238 = vector.load %arg2[%237, %c0_68] : memref<50x128xf32, #tpu.memory_space<vmem>>, vector<1x128xf32>
    %c1_69 = arith.constant 1 : index
    %239 = arith.index_cast %c7_i32 : i32 to index
    %240 = memref.load %arg1[%c1_69, %239] : memref<2x8xi32, #tpu.memory_space<smem>>
    %241 = arith.index_cast %240 : i32 to index
    %c0_70 = arith.constant 0 : index
    %242 = vector.load %arg2[%241, %c0_70] : memref<50x128xf32, #tpu.memory_space<vmem>>, vector<1x128xf32>
    %243 = tpu.concatenate %238, %242 in 0 : vector<1x128xf32>, vector<1x128xf32> -> vector<2x128xf32>
    %cst_71 = arith.constant dense<0.000000e+00> : vector<2x128xf32>
    %244 = tpu.matmul %227, %0, %cst_71 {dimension_numbers = #tpu.dot_dimension_numbers<[1], [0], [0], [1], [0, 0, 1, 1], [], []>} : vector<2x32xf32>, vector<32x128xf32>, vector<2x128xf32> -> vector<2x128xf32>
    %245 = arith.addf %243, %244 : vector<2x128xf32>
    %246 = arith.negf %245 : vector<2x128xf32>
    %247 = math.exp %246 : vector<2x128xf32>
    %cst_72 = arith.constant 1.000000e+00 : f32
    %248 = vector.broadcast %cst_72 : f32 to vector<2x128xf32>
    %249 = arith.addf %248, %247 : vector<2x128xf32>
    %250 = arith.divf %248, %249 : vector<2x128xf32>
    %251 = math.tanh %245 : vector<2x128xf32>
    %252 = vector.extract_strided_slice %250 {offsets = [0, 0], sizes = [2, 32], strides = [1, 1]} : vector<2x128xf32> to vector<2x32xf32>
    %253 = vector.extract_strided_slice %250 {offsets = [0, 32], sizes = [2, 32], strides = [1, 1]} : vector<2x128xf32> to vector<2x32xf32>
    %254 = vector.extract_strided_slice %251 {offsets = [0, 64], sizes = [2, 32], strides = [1, 1]} : vector<2x128xf32> to vector<2x32xf32>
    %255 = vector.extract_strided_slice %250 {offsets = [0, 96], sizes = [2, 32], strides = [1, 1]} : vector<2x128xf32> to vector<2x32xf32>
    %256 = arith.mulf %253, %225 : vector<2x32xf32>
    %257 = arith.mulf %252, %254 : vector<2x32xf32>
    %258 = arith.addf %256, %257 : vector<2x32xf32>
    %259 = math.tanh %258 : vector<2x32xf32>
    %260 = arith.mulf %255, %259 : vector<2x32xf32>
    %cst_73 = arith.constant dense<0.000000e+00> : vector<2x128xf32>
    %261 = tpu.matmul %260, %1, %cst_73 {dimension_numbers = #tpu.dot_dimension_numbers<[1], [0], [0], [1], [0, 0, 1, 1], [], []>} : vector<2x32xf32>, vector<32x128xf32>, vector<2x128xf32> -> vector<2x128xf32>
    %262 = vector.broadcast %2 : vector<1x128xf32> to vector<2x128xf32>
    %263 = arith.addf %261, %262 : vector<2x128xf32>
    %c2_i32_74 = arith.constant 2 : i32
    %264 = arith.muli %c7_i32, %c2_i32_74 : i32
    %265 = tpu.assume_multiple %264, 2 : i32
    %266 = arith.index_cast %265 : i32 to index
    %c0_75 = arith.constant 0 : index
    %267 = vector.load %arg6[%266, %c0_75] : memref<16x128xf32, #tpu.memory_space<vmem>>, vector<2x128xf32>
    tpu.vector_store %arg6[%266, %c0_75], %263 {strides = array<i32>} : memref<16x128xf32, #tpu.memory_space<vmem>>, vector<2x128xf32>,
    %c8_i32 = arith.constant 8 : i32
    return
  }
  func.func @transform_0(%arg0: i32, %arg1: memref<2x8xi32, #tpu.memory_space<smem>>) -> (i32, i32) {
    %c0_i32 = arith.constant 0 : i32
    %c0_i32_0 = arith.constant 0 : i32
    %c0_i32_1 = arith.constant 0 : i32
    return %c0_i32, %c0_i32_0 : i32, i32
  }
  func.func @transform_1(%arg0: i32, %arg1: memref<2x8xi32, #tpu.memory_space<smem>>) -> (i32, i32) {
    %c0_i32 = arith.constant 0 : i32
    %c0_i32_0 = arith.constant 0 : i32
    %c0_i32_1 = arith.constant 0 : i32
    return %c0_i32, %c0_i32_0 : i32, i32
  }
  func.func @transform_2(%arg0: i32, %arg1: memref<2x8xi32, #tpu.memory_space<smem>>) -> (i32, i32) {
    %c0_i32 = arith.constant 0 : i32
    %c0_i32_0 = arith.constant 0 : i32
    %c0_i32_1 = arith.constant 0 : i32
    return %c0_i32, %c0_i32_0 : i32, i32
  }
  func.func @transform_3(%arg0: i32, %arg1: memref<2x8xi32, #tpu.memory_space<smem>>) -> (i32, i32) {
    %c0_i32 = arith.constant 0 : i32
    %c0_i32_0 = arith.constant 0 : i32
    %c0_i32_1 = arith.constant 0 : i32
    return %c0_i32, %c0_i32_0 : i32, i32
  }
  func.func @transform_4(%arg0: i32, %arg1: memref<2x8xi32, #tpu.memory_space<smem>>) -> (i32, i32) {
    %c0_i32 = arith.constant 0 : i32
    %c0_i32_0 = arith.constant 0 : i32
    %c0_i32_1 = arith.constant 0 : i32
    return %c0_i32, %c0_i32_0 : i32, i32
  }
}

</mosaic_0001>

<llo_original>
// kernel: my_lstm_forward.1
$region0: #{my_lstm_forward.1}
  #allocation0 [shape = 'u32[]', space=smem, size = 0x4, offset = 0x4, fixed_abs, tag = 'smem constant byte address 0x4 - core index']
  #allocation1 [shape = 'u32[72,128]{1,0:T(1,128)}', space=vmem, size = 0x9000, scoped, tag = 'internal scratch']
  #allocation2 [shape = 's32[1]{0}', space=sflag, size = 0x4, scoped, tag = 'scoped memory for my_lstm_forward.1']
  #allocation3 [shape = 'u8[1024]{0}', space=smem, size = 0x400, scoped, tag = 'prefetched SMEM operand 0']
  %s0 = inlined_call_operand.vmem [shape: s32[2,8], index: 0, kind: input, shape index: {}]
  %s1 = inlined_call_operand.vmem [shape: f32[50,128], index: 1, kind: input, shape index: {}]
  %s2 = inlined_call_operand.vmem [shape: f32[32,128], index: 2, kind: input, shape index: {}]
  %s3 = inlined_call_operand.vmem [shape: f32[32,128], index: 3, kind: input, shape index: {}]
  %s4 = inlined_call_operand.vmem [shape: f32[1,128], index: 4, kind: input, shape index: {}]
  %s5 = inlined_call_operand.vmem [shape: f32[16,128], index: 5, kind: output, shape index: {}]
  %s6 = sld [smem:[#allocation0]]
  $region26: #{my_lstm_forward.1} parent=0
    _
  %s8 = ssub.s32 1, %s6
  %s9 = scalar_select 0, %s8, %s6
  %s11 = sshll.u32 %s0, 4
  %s12 = int_to_ptr.vmem [resolvable:$true] %s11
  %14 = dma.vmem_to_smem %s12, 32, [#allocation3], [#allocation2]
  %16 = dma.done [#allocation2], 32
  %17 = sfence
  // Predicated region
  $region2: #{my_lstm_forward.1} parent=0 // pred_check
    _
  $region3: #{my_lstm_forward.1} parent=0 // pred_check_branch
    %19 = sbr.rel (0) target = $region5
  $region4: #{my_lstm_forward.1} parent=0 // pred_region
    _
  $region5: #{my_lstm_forward.1} parent=0 // pred_fallthru
    _
  // Predicated region
  $region6: #{my_lstm_forward.1} parent=0 // pred_check
    _
  $region7: #{my_lstm_forward.1} parent=0 // pred_check_branch
    %21 = sbr.rel (0) target = $region9
  $region8: #{my_lstm_forward.1} parent=0 // pred_region
    _
  $region9: #{my_lstm_forward.1} parent=0 // pred_fallthru
    _
  // Predicated region
  $region10: #{my_lstm_forward.1} parent=0 // pred_check
    _
  $region11: #{my_lstm_forward.1} parent=0 // pred_check_branch
    %23 = sbr.rel (0) target = $region13
  $region12: #{my_lstm_forward.1} parent=0 // pred_region
    _
  $region13: #{my_lstm_forward.1} parent=0 // pred_fallthru
    _
  // Predicated region
  $region14: #{my_lstm_forward.1} parent=0 // pred_check
    _
  $region15: #{my_lstm_forward.1} parent=0 // pred_check_branch
    %25 = sbr.rel (0) target = $region17
  $region16: #{my_lstm_forward.1} parent=0 // pred_region
    _
  $region17: #{my_lstm_forward.1} parent=0 // pred_fallthru
    _
  %v26 = vld [vmem:[%s2] sm:$0xff]
  %v27 = vld [vmem:[%s2 + $0x8] sm:$0xff]
  %v28 = vld [vmem:[%s2 + $0x10] sm:$0xff]
  %v29 = vld [vmem:[%s2 + $0x18] sm:$0xff]
  %v30 = vld [vmem:[%s3] sm:$0xff]
  %v31 = vld [vmem:[%s3 + $0x8] sm:$0xff]
  %v32 = vld [vmem:[%s3 + $0x10] sm:$0xff]
  %v33 = vld [vmem:[%s3 + $0x18] sm:$0xff]
  %v34 = vld [vmem:[%s4] sm:$0x1]
  %s35 = sld [smem:[#allocation3]]
  %s36 = scalar_lea.vmem %s1, %s35
  %v37 = vld [vmem:[%s36] sm:$0x1]
  %s38 = sld [smem:[#allocation3 + $0x80]]
  %s39 = scalar_lea.vmem %s1, %s38
  %v40 = vld [vmem:[%s39] sm:$0x1]
  %v42 = vrot.slane %v40, 7
  %vm44 = vcmask 1040384
  %v45 = vsel %vm44, %v37, %v42
  %vm46 = vcmask 261120
  %v48 = vsel %vm46, 0.0, 0
  %50 = vmatpush.msra.mxu0 0.0
  %51 = vmatpush.msra.mxu0 0.0
  %52 = vmatpush.msra.mxu0 0.0
  %53 = vmatpush.msra.mxu0 0.0
  %54 = vmatpush.msra.mxu0 0.0
  %55 = vmatpush.msra.mxu0 0.0
  %56 = vmatpush.msra.mxu0 0.0
  %57 = vmatpush.msra.mxu0 0.0
  %58 = vmatpush.msra.mxu0 0.0
  %59 = vmatpush.msra.mxu0 0.0
  %60 = vmatpush.msra.mxu0 0.0
  %61 = vmatpush.msra.mxu0 0.0
  %62 = vmatpush.msra.mxu0 %v29
  %63 = vmatpush.msra.mxu0 %v28
  %64 = vmatpush.msra.mxu0 %v27
  %65 = vmatpush.msra.mxu0 %v26
  %66 = vmatmul.f32.gmra.mxu0 %v48
  %v67 = vpop.f32.mrf.mxu0
  %v68 = vadd.f32 0.0, %v67
  %69 = vdwg.mxu0
  %v70 = vadd.f32 %v45, %v68
  %v71 = vxor.u32 %v70, 2147483648
  %v72 = vmul.f32 %v71, 1.442695
  %v73 = vpow.pop %v72
  %v74 = vadd.f32 %v73, 1.0
  %v75 = vrcp.pop %v74
  %v76 = vmul.f32 %v74, %v75
  %v77 = vsub.f32 1.0, %v76
  %v78 = vmul.f32 %v75, %v77
  %v79 = vadd.f32 %v75, %v78
  %vm80 = vweird.f32 %v74
  %vm81 = vweird.f32 %v75
  %vm82 = vmor %vm80, %vm81
  %v83 = vsel %vm82, %v75, %v79
  %v84 = vand.u32 2147483647, %v74
  %vm85 = vcmp.eq.f32.partialorder %v84, 8.507059e+37
  %v86 = vand.u32 %v74, 2147483648
  %v87 = vor.u32 1.1754944e-38, %v86
  %v88 = vsel %vm85, %v87, %v83
  %v89 = vmul.f32 1.0, %v88
  %v90 = vtanh.pop %v70
  %v91 = vmul.f32 %v89, 0.0
  %93 = vrot.lane.b32.xlu0 %v90, 64
  %v94 = vpop.permute.xlu0 %93
  %v96 = vmul.f32 %v89, %v94
  %98 = vrot.lane.b32.xlu0 %v96, 32
  %v99 = vpop.permute.xlu0 %98
  %v101 = vadd.f32 %v91, %v99
  %v102 = vtanh.pop %v101
  %104 = vrot.lane.b32.xlu0 %v102, 64
  %v105 = vpop.permute.xlu0 %104
  %v107 = vmul.f32 %v89, %v105
  %v109 = vperm.slane %v34, 0
  %112 = vrot.lane.b32.xlu0 %v107, 32
  %v113 = vpop.permute.xlu0 %112
  %v114 = vsel %vm46, %v113, 0
  %116 = vmatpush.msra.mxu0 0.0
  %117 = vmatpush.msra.mxu0 0.0
  %118 = vmatpush.msra.mxu0 0.0
  %119 = vmatpush.msra.mxu0 0.0
  %120 = vmatpush.msra.mxu0 0.0
  %121 = vmatpush.msra.mxu0 0.0
  %122 = vmatpush.msra.mxu0 0.0
  %123 = vmatpush.msra.mxu0 0.0
  %124 = vmatpush.msra.mxu0 0.0
  %125 = vmatpush.msra.mxu0 0.0
  %126 = vmatpush.msra.mxu0 0.0
  %127 = vmatpush.msra.mxu0 0.0
  %128 = vmatpush.msra.mxu0 %v33
  %129 = vmatpush.msra.mxu0 %v32
  %130 = vmatpush.msra.mxu0 %v31
  %131 = vmatpush.msra.mxu0 %v30
  %132 = vmatmul.f32.gmra.mxu0 %v114
  %v133 = vpop.f32.mrf.mxu0
  %v134 = vadd.f32 %v109, %v133
  %135 = vdwg.mxu0
  %136 = vst [vmem:[%s5] sm:$0x3] %v134
  %s137 = sld [smem:[#allocation3 + $0x1]]
  %s138 = scalar_lea.vmem %s1, %s137
  %v139 = vld [vmem:[%s138] sm:$0x1]
  %s140 = sld [smem:[#allocation3 + $0x81]]
  %s141 = scalar_lea.vmem %s1, %s140
  %v142 = vld [vmem:[%s141] sm:$0x1]
  %v144 = vrot.slane %v142, 7
  %v146 = vsel %vm44, %v139, %v144
  %147 = vmatpush.msra.mxu0 0.0
  %148 = vmatpush.msra.mxu0 0.0
  %149 = vmatpush.msra.mxu0 0.0
  %150 = vmatpush.msra.mxu0 0.0
  %151 = vmatpush.msra.mxu0 0.0
  %152 = vmatpush.msra.mxu0 0.0
  %153 = vmatpush.msra.mxu0 0.0
  %154 = vmatpush.msra.mxu0 0.0
  %155 = vmatpush.msra.mxu0 0.0
  %156 = vmatpush.msra.mxu0 0.0
  %157 = vmatpush.msra.mxu0 0.0
  %158 = vmatpush.msra.mxu0 0.0
  %159 = vmatpush.msra.mxu0 %v29
  %160 = vmatpush.msra.mxu0 %v28
  %161 = vmatpush.msra.mxu0 %v27
  %162 = vmatpush.msra.mxu0 %v26
  %163 = vmatmul.f32.gmra.mxu0 %v114
  %v164 = vpop.f32.mrf.mxu0
  %v165 = vadd.f32 0.0, %v164
  %166 = vdwg.mxu0
  %v167 = vadd.f32 %v146, %v165
  %v168 = vxor.u32 %v167, 2147483648
  %v169 = vmul.f32 %v168, 1.442695
  %v170 = vpow.pop %v169
  %v171 = vadd.f32 %v170, 1.0
  %v172 = vrcp.pop %v171
  %v173 = vmul.f32 %v171, %v172
  %v174 = vsub.f32 1.0, %v173
  %v175 = vmul.f32 %v172, %v174
  %v176 = vadd.f32 %v172, %v175
  %vm177 = vweird.f32 %v171
  %vm178 = vweird.f32 %v172
  %vm179 = vmor %vm177, %vm178
  %v180 = vsel %vm179, %v172, %v176
  %v181 = vand.u32 2147483647, %v171
  %vm182 = vcmp.eq.f32.partialorder %v181, 8.507059e+37
  %v183 = vand.u32 %v171, 2147483648
  %v184 = vor.u32 1.1754944e-38, %v183
  %v185 = vsel %vm182, %v184, %v180
  %v186 = vmul.f32 1.0, %v185
  %v187 = vtanh.pop %v167
  %v188 = vmul.f32 %v186, %v101
  %190 = vrot.lane.b32.xlu0 %v187, 64
  %v191 = vpop.permute.xlu0 %190
  %v193 = vmul.f32 %v186, %v191
  %195 = vrot.lane.b32.xlu0 %v193, 32
  %v196 = vpop.permute.xlu0 %195
  %v198 = vadd.f32 %v188, %v196
  %v199 = vtanh.pop %v198
  %201 = vrot.lane.b32.xlu0 %v199, 64
  %v202 = vpop.permute.xlu0 %201
  %v204 = vmul.f32 %v186, %v202
  %206 = vrot.lane.b32.xlu0 %v204, 32
  %v207 = vpop.permute.xlu0 %206
  %v208 = vsel %vm46, %v207, 0
  %210 = vmatpush.msra.mxu0 0.0
  %211 = vmatpush.msra.mxu0 0.0
  %212 = vmatpush.msra.mxu0 0.0
  %213 = vmatpush.msra.mxu0 0.0
  %214 = vmatpush.msra.mxu0 0.0
  %215 = vmatpush.msra.mxu0 0.0
  %216 = vmatpush.msra.mxu0 0.0
  %217 = vmatpush.msra.mxu0 0.0
  %218 = vmatpush.msra.mxu0 0.0
  %219 = vmatpush.msra.mxu0 0.0
  %220 = vmatpush.msra.mxu0 0.0
  %221 = vmatpush.msra.mxu0 0.0
  %222 = vmatpush.msra.mxu0 %v33
  %223 = vmatpush.msra.mxu0 %v32
  %224 = vmatpush.msra.mxu0 %v31
  %225 = vmatpush.msra.mxu0 %v30
  %226 = vmatmul.f32.gmra.mxu0 %v208
  %v227 = vpop.f32.mrf.mxu0
  %v228 = vadd.f32 %v109, %v227
  %229 = vdwg.mxu0
  %s230 = scalar_lea.vmem %s5, 2
  %231 = vst [vmem:[%s230] sm:$0x3] %v228
  %s232 = sld [smem:[#allocation3 + $0x2]]
  %s233 = scalar_lea.vmem %s1, %s232
  %v234 = vld [vmem:[%s233] sm:$0x1]
  %s235 = sld [smem:[#allocation3 + $0x82]]
  %s236 = scalar_lea.vmem %s1, %s235
  %v237 = vld [vmem:[%s236] sm:$0x1]
  %v239 = vrot.slane %v237, 7
  %v241 = vsel %vm44, %v234, %v239
  %242 = vmatpush.msra.mxu0 0.0
  %243 = vmatpush.msra.mxu0 0.0
  %244 = vmatpush.msra.mxu0 0.0
  %245 = vmatpush.msra.mxu0 0.0
  %246 = vmatpush.msra.mxu0 0.0
  %247 = vmatpush.msra.mxu0 0.0
  %248 = vmatpush.msra.mxu0 0.0
  %249 = vmatpush.msra.mxu0 0.0
  %250 = vmatpush.msra.mxu0 0.0
  %251 = vmatpush.msra.mxu0 0.0
  %252 = vmatpush.msra.mxu0 0.0
  %253 = vmatpush.msra.mxu0 0.0
  %254 = vmatpush.msra.mxu0 %v29
  %255 = vmatpush.msra.mxu0 %v28
  %256 = vmatpush.msra.mxu0 %v27
  %257 = vmatpush.msra.mxu0 %v26
  %258 = vmatmul.f32.gmra.mxu0 %v208
  %v259 = vpop.f32.mrf.mxu0
  %v260 = vadd.f32 0.0, %v259
  %261 = vdwg.mxu0
  %v262 = vadd.f32 %v241, %v260
  %v263 = vxor.u32 %v262, 2147483648
  %v264 = vmul.f32 %v263, 1.442695
  %v265 = vpow.pop %v264
  %v266 = vadd.f32 %v265, 1.0
  %v267 = vrcp.pop %v266
  %v268 = vmul.f32 %v266, %v267
  %v269 = vsub.f32 1.0, %v268
  %v270 = vmul.f32 %v267, %v269
  %v271 = vadd.f32 %v267, %v270
  %vm272 = vweird.f32 %v266
  %vm273 = vweird.f32 %v267
  %vm274 = vmor %vm272, %vm273
  %v275 = vsel %vm274, %v267, %v271
  %v276 = vand.u32 2147483647, %v266
  %vm277 = vcmp.eq.f32.partialorder %v276, 8.507059e+37
  %v278 = vand.u32 %v266, 2147483648
  %v279 = vor.u32 1.1754944e-38, %v278
  %v280 = vsel %vm277, %v279, %v275
  %v281 = vmul.f32 1.0, %v280
  %v282 = vtanh.pop %v262
  %v283 = vmul.f32 %v281, %v198
  %285 = vrot.lane.b32.xlu0 %v282, 64
  %v286 = vpop.permute.xlu0 %285
  %v288 = vmul.f32 %v281, %v286
  %290 = vrot.lane.b32.xlu0 %v288, 32
  %v291 = vpop.permute.xlu0 %290
  %v293 = vadd.f32 %v283, %v291
  %v294 = vtanh.pop %v293
  %296 = vrot.lane.b32.xlu0 %v294, 64
  %v297 = vpop.permute.xlu0 %296
  %v299 = vmul.f32 %v281, %v297
  %301 = vrot.lane.b32.xlu0 %v299, 32
  %v302 = vpop.permute.xlu0 %301
  %v303 = vsel %vm46, %v302, 0
  %305 = vmatpush.msra.mxu0 0.0
  %306 = vmatpush.msra.mxu0 0.0
  %307 = vmatpush.msra.mxu0 0.0
  %308 = vmatpush.msra.mxu0 0.0
  %309 = vmatpush.msra.mxu0 0.0
  %310 = vmatpush.msra.mxu0 0.0
  %311 = vmatpush.msra.mxu0 0.0
  %312 = vmatpush.msra.mxu0 0.0
  %313 = vmatpush.msra.mxu0 0.0
  %314 = vmatpush.msra.mxu0 0.0
  %315 = vmatpush.msra.mxu0 0.0
  %316 = vmatpush.msra.mxu0 0.0
  %317 = vmatpush.msra.mxu0 %v33
  %318 = vmatpush.msra.mxu0 %v32
  %319 = vmatpush.msra.mxu0 %v31
  %320 = vmatpush.msra.mxu0 %v30
  %321 = vmatmul.f32.gmra.mxu0 %v303
  %v322 = vpop.f32.mrf.mxu0
  %v323 = vadd.f32 %v109, %v322
  %324 = vdwg.mxu0
  %s325 = scalar_lea.vmem %s5, 4
  %326 = vst [vmem:[%s325] sm:$0x3] %v323
  %s327 = sld [smem:[#allocation3 + $0x3]]
  %s328 = scalar_lea.vmem %s1, %s327
  %v329 = vld [vmem:[%s328] sm:$0x1]
  %s330 = sld [smem:[#allocation3 + $0x83]]
  %s331 = scalar_lea.vmem %s1, %s330
  %v332 = vld [vmem:[%s331] sm:$0x1]
  %v334 = vrot.slane %v332, 7
  %v336 = vsel %vm44, %v329, %v334
  %337 = vmatpush.msra.mxu0 0.0
  %338 = vmatpush.msra.mxu0 0.0
  %339 = vmatpush.msra.mxu0 0.0
  %340 = vmatpush.msra.mxu0 0.0
  %341 = vmatpush.msra.mxu0 0.0
  %342 = vmatpush.msra.mxu0 0.0
  %343 = vmatpush.msra.mxu0 0.0
  %344 = vmatpush.msra.mxu0 0.0
  %345 = vmatpush.msra.mxu0 0.0
  %346 = vmatpush.msra.mxu0 0.0
  %347 = vmatpush.msra.mxu0 0.0
  %348 = vmatpush.msra.mxu0 0.0
  %349 = vmatpush.msra.mxu0 %v29
  %350 = vmatpush.msra.mxu0 %v28
  %351 = vmatpush.msra.mxu0 %v27
  %352 = vmatpush.msra.mxu0 %v26
  %353 = vmatmul.f32.gmra.mxu0 %v303
  %v354 = vpop.f32.mrf.mxu0
  %v355 = vadd.f32 0.0, %v354
  %356 = vdwg.mxu0
  %v357 = vadd.f32 %v336, %v355
  %v358 = vxor.u32 %v357, 2147483648
  %v359 = vmul.f32 %v358, 1.442695
  %v360 = vpow.pop %v359
  %v361 = vadd.f32 %v360, 1.0
  %v362 = vrcp.pop %v361
  %v363 = vmul.f32 %v361, %v362
  %v364 = vsub.f32 1.0, %v363
  %v365 = vmul.f32 %v362, %v364
  %v366 = vadd.f32 %v362, %v365
  %vm367 = vweird.f32 %v361
  %vm368 = vweird.f32 %v362
  %vm369 = vmor %vm367, %vm368
  %v370 = vsel %vm369, %v362, %v366
  %v371 = vand.u32 2147483647, %v361
  %vm372 = vcmp.eq.f32.partialorder %v371, 8.507059e+37
  %v373 = vand.u32 %v361, 2147483648
  %v374 = vor.u32 1.1754944e-38, %v373
  %v375 = vsel %vm372, %v374, %v370
  %v376 = vmul.f32 1.0, %v375
  %v377 = vtanh.pop %v357
  %v378 = vmul.f32 %v376, %v293
  %380 = vrot.lane.b32.xlu0 %v377, 64
  %v381 = vpop.permute.xlu0 %380
  %v383 = vmul.f32 %v376, %v381
  %385 = vrot.lane.b32.xlu0 %v383, 32
  %v386 = vpop.permute.xlu0 %385
  %v388 = vadd.f32 %v378, %v386
  %v389 = vtanh.pop %v388
  %391 = vrot.lane.b32.xlu0 %v389, 64
  %v392 = vpop.permute.xlu0 %391
  %v394 = vmul.f32 %v376, %v392
  %396 = vrot.lane.b32.xlu0 %v394, 32
  %v397 = vpop.permute.xlu0 %396
  %v398 = vsel %vm46, %v397, 0
  %400 = vmatpush.msra.mxu0 0.0
  %401 = vmatpush.msra.mxu0 0.0
  %402 = vmatpush.msra.mxu0 0.0
  %403 = vmatpush.msra.mxu0 0.0
  %404 = vmatpush.msra.mxu0 0.0
  %405 = vmatpush.msra.mxu0 0.0
  %406 = vmatpush.msra.mxu0 0.0
  %407 = vmatpush.msra.mxu0 0.0
  %408 = vmatpush.msra.mxu0 0.0
  %409 = vmatpush.msra.mxu0 0.0
  %410 = vmatpush.msra.mxu0 0.0
  %411 = vmatpush.msra.mxu0 0.0
  %412 = vmatpush.msra.mxu0 %v33
  %413 = vmatpush.msra.mxu0 %v32
  %414 = vmatpush.msra.mxu0 %v31
  %415 = vmatpush.msra.mxu0 %v30
  %416 = vmatmul.f32.gmra.mxu0 %v398
  %v417 = vpop.f32.mrf.mxu0
  %v418 = vadd.f32 %v109, %v417
  %419 = vdwg.mxu0
  %s420 = scalar_lea.vmem %s5, 6
  %421 = vst [vmem:[%s420] sm:$0x3] %v418
  %s422 = sld [smem:[#allocation3 + $0x4]]
  %s423 = scalar_lea.vmem %s1, %s422
  %v424 = vld [vmem:[%s423] sm:$0x1]
  %s425 = sld [smem:[#allocation3 + $0x84]]
  %s426 = scalar_lea.vmem %s1, %s425
  %v427 = vld [vmem:[%s426] sm:$0x1]
  %v429 = vrot.slane %v427, 7
  %v431 = vsel %vm44, %v424, %v429
  %432 = vmatpush.msra.mxu0 0.0
  %433 = vmatpush.msra.mxu0 0.0
  %434 = vmatpush.msra.mxu0 0.0
  %435 = vmatpush.msra.mxu0 0.0
  %436 = vmatpush.msra.mxu0 0.0
  %437 = vmatpush.msra.mxu0 0.0
  %438 = vmatpush.msra.mxu0 0.0
  %439 = vmatpush.msra.mxu0 0.0
  %440 = vmatpush.msra.mxu0 0.0
  %441 = vmatpush.msra.mxu0 0.0
  %442 = vmatpush.msra.mxu0 0.0
  %443 = vmatpush.msra.mxu0 0.0
  %444 = vmatpush.msra.mxu0 %v29
  %445 = vmatpush.msra.mxu0 %v28
  %446 = vmatpush.msra.mxu0 %v27
  %447 = vmatpush.msra.mxu0 %v26
  %448 = vmatmul.f32.gmra.mxu0 %v398
  %v449 = vpop.f32.mrf.mxu0
  %v450 = vadd.f32 0.0, %v449
  %451 = vdwg.mxu0
  %v452 = vadd.f32 %v431, %v450
  %v453 = vxor.u32 %v452, 2147483648
  %v454 = vmul.f32 %v453, 1.442695
  %v455 = vpow.pop %v454
  %v456 = vadd.f32 %v455, 1.0
  %v457 = vrcp.pop %v456
  %v458 = vmul.f32 %v456, %v457
  %v459 = vsub.f32 1.0, %v458
  %v460 = vmul.f32 %v457, %v459
  %v461 = vadd.f32 %v457, %v460
  %vm462 = vweird.f32 %v456
  %vm463 = vweird.f32 %v457
  %vm464 = vmor %vm462, %vm463
  %v465 = vsel %vm464, %v457, %v461
  %v466 = vand.u32 2147483647, %v456
  %vm467 = vcmp.eq.f32.partialorder %v466, 8.507059e+37
  %v468 = vand.u32 %v456, 2147483648
  %v469 = vor.u32 1.1754944e-38, %v468
  %v470 = vsel %vm467, %v469, %v465
  %v471 = vmul.f32 1.0, %v470
  %v472 = vtanh.pop %v452
  %v473 = vmul.f32 %v471, %v388
  %475 = vrot.lane.b32.xlu0 %v472, 64
  %v476 = vpop.permute.xlu0 %475
  %v478 = vmul.f32 %v471, %v476
  %480 = vrot.lane.b32.xlu0 %v478, 32
  %v481 = vpop.permute.xlu0 %480
  %v483 = vadd.f32 %v473, %v481
  %v484 = vtanh.pop %v483
  %486 = vrot.lane.b32.xlu0 %v484, 64
  %v487 = vpop.permute.xlu0 %486
  %v489 = vmul.f32 %v471, %v487
  %491 = vrot.lane.b32.xlu0 %v489, 32
  %v492 = vpop.permute.xlu0 %491
  %v493 = vsel %vm46, %v492, 0
  %495 = vmatpush.msra.mxu0 0.0
  %496 = vmatpush.msra.mxu0 0.0
  %497 = vmatpush.msra.mxu0 0.0
  %498 = vmatpush.msra.mxu0 0.0
  %499 = vmatpush.msra.mxu0 0.0
  %500 = vmatpush.msra.mxu0 0.0
  %501 = vmatpush.msra.mxu0 0.0
  %502 = vmatpush.msra.mxu0 0.0
  %503 = vmatpush.msra.mxu0 0.0
  %504 = vmatpush.msra.mxu0 0.0
  %505 = vmatpush.msra.mxu0 0.0
  %506 = vmatpush.msra.mxu0 0.0
  %507 = vmatpush.msra.mxu0 %v33
  %508 = vmatpush.msra.mxu0 %v32
  %509 = vmatpush.msra.mxu0 %v31
  %510 = vmatpush.msra.mxu0 %v30
  %511 = vmatmul.f32.gmra.mxu0 %v493
  %v512 = vpop.f32.mrf.mxu0
  %v513 = vadd.f32 %v109, %v512
  %514 = vdwg.mxu0
  %s515 = scalar_lea.vmem %s5, 8
  %516 = vst [vmem:[%s515] sm:$0x3] %v513
  %s517 = sld [smem:[#allocation3 + $0x5]]
  %s518 = scalar_lea.vmem %s1, %s517
  %v519 = vld [vmem:[%s518] sm:$0x1]
  %s520 = sld [smem:[#allocation3 + $0x85]]
  %s521 = scalar_lea.vmem %s1, %s520
  %v522 = vld [vmem:[%s521] sm:$0x1]
  %v524 = vrot.slane %v522, 7
  %v526 = vsel %vm44, %v519, %v524
  %527 = vmatpush.msra.mxu0 0.0
  %528 = vmatpush.msra.mxu0 0.0
  %529 = vmatpush.msra.mxu0 0.0
  %530 = vmatpush.msra.mxu0 0.0
  %531 = vmatpush.msra.mxu0 0.0
  %532 = vmatpush.msra.mxu0 0.0
  %533 = vmatpush.msra.mxu0 0.0
  %534 = vmatpush.msra.mxu0 0.0
  %535 = vmatpush.msra.mxu0 0.0
  %536 = vmatpush.msra.mxu0 0.0
  %537 = vmatpush.msra.mxu0 0.0
  %538 = vmatpush.msra.mxu0 0.0
  %539 = vmatpush.msra.mxu0 %v29
  %540 = vmatpush.msra.mxu0 %v28
  %541 = vmatpush.msra.mxu0 %v27
  %542 = vmatpush.msra.mxu0 %v26
  %543 = vmatmul.f32.gmra.mxu0 %v493
  %v544 = vpop.f32.mrf.mxu0
  %v545 = vadd.f32 0.0, %v544
  %546 = vdwg.mxu0
  %v547 = vadd.f32 %v526, %v545
  %v548 = vxor.u32 %v547, 2147483648
  %v549 = vmul.f32 %v548, 1.442695
  %v550 = vpow.pop %v549
  %v551 = vadd.f32 %v550, 1.0
  %v552 = vrcp.pop %v551
  %v553 = vmul.f32 %v551, %v552
  %v554 = vsub.f32 1.0, %v553
  %v555 = vmul.f32 %v552, %v554
  %v556 = vadd.f32 %v552, %v555
  %vm557 = vweird.f32 %v551
  %vm558 = vweird.f32 %v552
  %vm559 = vmor %vm557, %vm558
  %v560 = vsel %vm559, %v552, %v556
  %v561 = vand.u32 2147483647, %v551
  %vm562 = vcmp.eq.f32.partialorder %v561, 8.507059e+37
  %v563 = vand.u32 %v551, 2147483648
  %v564 = vor.u32 1.1754944e-38, %v563
  %v565 = vsel %vm562, %v564, %v560
  %v566 = vmul.f32 1.0, %v565
  %v567 = vtanh.pop %v547
  %v568 = vmul.f32 %v566, %v483
  %570 = vrot.lane.b32.xlu0 %v567, 64
  %v571 = vpop.permute.xlu0 %570
  %v573 = vmul.f32 %v566, %v571
  %575 = vrot.lane.b32.xlu0 %v573, 32
  %v576 = vpop.permute.xlu0 %575
  %v578 = vadd.f32 %v568, %v576
  %v579 = vtanh.pop %v578
  %581 = vrot.lane.b32.xlu0 %v579, 64
  %v582 = vpop.permute.xlu0 %581
  %v584 = vmul.f32 %v566, %v582
  %586 = vrot.lane.b32.xlu0 %v584, 32
  %v587 = vpop.permute.xlu0 %586
  %v588 = vsel %vm46, %v587, 0
  %590 = vmatpush.msra.mxu0 0.0
  %591 = vmatpush.msra.mxu0 0.0
  %592 = vmatpush.msra.mxu0 0.0
  %593 = vmatpush.msra.mxu0 0.0
  %594 = vmatpush.msra.mxu0 0.0
  %595 = vmatpush.msra.mxu0 0.0
  %596 = vmatpush.msra.mxu0 0.0
  %597 = vmatpush.msra.mxu0 0.0
  %598 = vmatpush.msra.mxu0 0.0
  %599 = vmatpush.msra.mxu0 0.0
  %600 = vmatpush.msra.mxu0 0.0
  %601 = vmatpush.msra.mxu0 0.0
  %602 = vmatpush.msra.mxu0 %v33
  %603 = vmatpush.msra.mxu0 %v32
  %604 = vmatpush.msra.mxu0 %v31
  %605 = vmatpush.msra.mxu0 %v30
  %606 = vmatmul.f32.gmra.mxu0 %v588
  %v607 = vpop.f32.mrf.mxu0
  %v608 = vadd.f32 %v109, %v607
  %609 = vdwg.mxu0
  %s610 = scalar_lea.vmem %s5, 10
  %611 = vst [vmem:[%s610] sm:$0x3] %v608
  %s612 = sld [smem:[#allocation3 + $0x6]]
  %s613 = scalar_lea.vmem %s1, %s612
  %v614 = vld [vmem:[%s613] sm:$0x1]
  %s615 = sld [smem:[#allocation3 + $0x86]]
  %s616 = scalar_lea.vmem %s1, %s615
  %v617 = vld [vmem:[%s616] sm:$0x1]
  %v619 = vrot.slane %v617, 7
  %v621 = vsel %vm44, %v614, %v619
  %622 = vmatpush.msra.mxu0 0.0
  %623 = vmatpush.msra.mxu0 0.0
  %624 = vmatpush.msra.mxu0 0.0
  %625 = vmatpush.msra.mxu0 0.0
  %626 = vmatpush.msra.mxu0 0.0
  %627 = vmatpush.msra.mxu0 0.0
  %628 = vmatpush.msra.mxu0 0.0
  %629 = vmatpush.msra.mxu0 0.0
  %630 = vmatpush.msra.mxu0 0.0
  %631 = vmatpush.msra.mxu0 0.0
  %632 = vmatpush.msra.mxu0 0.0
  %633 = vmatpush.msra.mxu0 0.0
  %634 = vmatpush.msra.mxu0 %v29
  %635 = vmatpush.msra.mxu0 %v28
  %636 = vmatpush.msra.mxu0 %v27
  %637 = vmatpush.msra.mxu0 %v26
  %638 = vmatmul.f32.gmra.mxu0 %v588
  %v639 = vpop.f32.mrf.mxu0
  %v640 = vadd.f32 0.0, %v639
  %641 = vdwg.mxu0
  %v642 = vadd.f32 %v621, %v640
  %v643 = vxor.u32 %v642, 2147483648
  %v644 = vmul.f32 %v643, 1.442695
  %v645 = vpow.pop %v644
  %v646 = vadd.f32 %v645, 1.0
  %v647 = vrcp.pop %v646
  %v648 = vmul.f32 %v646, %v647
  %v649 = vsub.f32 1.0, %v648
  %v650 = vmul.f32 %v647, %v649
  %v651 = vadd.f32 %v647, %v650
  %vm652 = vweird.f32 %v646
  %vm653 = vweird.f32 %v647
  %vm654 = vmor %vm652, %vm653
  %v655 = vsel %vm654, %v647, %v651
  %v656 = vand.u32 2147483647, %v646
  %vm657 = vcmp.eq.f32.partialorder %v656, 8.507059e+37
  %v658 = vand.u32 %v646, 2147483648
  %v659 = vor.u32 1.1754944e-38, %v658
  %v660 = vsel %vm657, %v659, %v655
  %v661 = vmul.f32 1.0, %v660
  %v662 = vtanh.pop %v642
  %v663 = vmul.f32 %v661, %v578
  %665 = vrot.lane.b32.xlu0 %v662, 64
  %v666 = vpop.permute.xlu0 %665
  %v668 = vmul.f32 %v661, %v666
  %670 = vrot.lane.b32.xlu0 %v668, 32
  %v671 = vpop.permute.xlu0 %670
  %v673 = vadd.f32 %v663, %v671
  %v674 = vtanh.pop %v673
  %676 = vrot.lane.b32.xlu0 %v674, 64
  %v677 = vpop.permute.xlu0 %676
  %v679 = vmul.f32 %v661, %v677
  %681 = vrot.lane.b32.xlu0 %v679, 32
  %v682 = vpop.permute.xlu0 %681
  %v683 = vsel %vm46, %v682, 0
  %685 = vmatpush.msra.mxu0 0.0
  %686 = vmatpush.msra.mxu0 0.0
  %687 = vmatpush.msra.mxu0 0.0
  %688 = vmatpush.msra.mxu0 0.0
  %689 = vmatpush.msra.mxu0 0.0
  %690 = vmatpush.msra.mxu0 0.0
  %691 = vmatpush.msra.mxu0 0.0
  %692 = vmatpush.msra.mxu0 0.0
  %693 = vmatpush.msra.mxu0 0.0
  %694 = vmatpush.msra.mxu0 0.0
  %695 = vmatpush.msra.mxu0 0.0
  %696 = vmatpush.msra.mxu0 0.0
  %697 = vmatpush.msra.mxu0 %v33
  %698 = vmatpush.msra.mxu0 %v32
  %699 = vmatpush.msra.mxu0 %v31
  %700 = vmatpush.msra.mxu0 %v30
  %701 = vmatmul.f32.gmra.mxu0 %v683
  %v702 = vpop.f32.mrf.mxu0
  %v703 = vadd.f32 %v109, %v702
  %704 = vdwg.mxu0
  %s705 = scalar_lea.vmem %s5, 12
  %706 = vst [vmem:[%s705] sm:$0x3] %v703
  %s707 = sld [smem:[#allocation3 + $0x7]]
  %s708 = scalar_lea.vmem %s1, %s707
  %v709 = vld [vmem:[%s708] sm:$0x1]
  %s710 = sld [smem:[#allocation3 + $0x87]]
  %s711 = scalar_lea.vmem %s1, %s710
  %v712 = vld [vmem:[%s711] sm:$0x1]
  %v714 = vrot.slane %v712, 7
  %v716 = vsel %vm44, %v709, %v714
  %717 = vmatpush.msra.mxu0 0.0
  %718 = vmatpush.msra.mxu0 0.0
  %719 = vmatpush.msra.mxu0 0.0
  %720 = vmatpush.msra.mxu0 0.0
  %721 = vmatpush.msra.mxu0 0.0
  %722 = vmatpush.msra.mxu0 0.0
  %723 = vmatpush.msra.mxu0 0.0
  %724 = vmatpush.msra.mxu0 0.0
  %725 = vmatpush.msra.mxu0 0.0
  %726 = vmatpush.msra.mxu0 0.0
  %727 = vmatpush.msra.mxu0 0.0
  %728 = vmatpush.msra.mxu0 0.0
  %729 = vmatpush.msra.mxu0 %v29
  %730 = vmatpush.msra.mxu0 %v28
  %731 = vmatpush.msra.mxu0 %v27
  %732 = vmatpush.msra.mxu0 %v26
  %733 = vmatmul.f32.gmra.mxu0 %v683
  %v734 = vpop.f32.mrf.mxu0
  %v735 = vadd.f32 0.0, %v734
  %736 = vdwg.mxu0
  %v737 = vadd.f32 %v716, %v735
  %v738 = vxor.u32 %v737, 2147483648
  %v739 = vmul.f32 %v738, 1.442695
  %v740 = vpow.pop %v739
  %v741 = vadd.f32 %v740, 1.0
  %v742 = vrcp.pop %v741
  %v743 = vmul.f32 %v741, %v742
  %v744 = vsub.f32 1.0, %v743
  %v745 = vmul.f32 %v742, %v744
  %v746 = vadd.f32 %v742, %v745
  %vm747 = vweird.f32 %v741
  %vm748 = vweird.f32 %v742
  %vm749 = vmor %vm747, %vm748
  %v750 = vsel %vm749, %v742, %v746
  %v751 = vand.u32 2147483647, %v741
  %vm752 = vcmp.eq.f32.partialorder %v751, 8.507059e+37
  %v753 = vand.u32 %v741, 2147483648
  %v754 = vor.u32 1.1754944e-38, %v753
  %v755 = vsel %vm752, %v754, %v750
  %v756 = vmul.f32 1.0, %v755
  %v757 = vtanh.pop %v737
  %v758 = vmul.f32 %v756, %v673
  %760 = vrot.lane.b32.xlu0 %v757, 64
  %v761 = vpop.permute.xlu0 %760
  %v763 = vmul.f32 %v756, %v761
  %765 = vrot.lane.b32.xlu0 %v763, 32
  %v766 = vpop.permute.xlu0 %765
  %v768 = vadd.f32 %v758, %v766
  %v769 = vtanh.pop %v768
  %771 = vrot.lane.b32.xlu0 %v769, 64
  %v772 = vpop.permute.xlu0 %771
  %v774 = vmul.f32 %v756, %v772
  %776 = vrot.lane.b32.xlu0 %v774, 32
  %v777 = vpop.permute.xlu0 %776
  %v778 = vsel %vm46, %v777, 0
  %780 = vmatpush.msra.mxu0 0.0
  %781 = vmatpush.msra.mxu0 0.0
  %782 = vmatpush.msra.mxu0 0.0
  %783 = vmatpush.msra.mxu0 0.0
  %784 = vmatpush.msra.mxu0 0.0
  %785 = vmatpush.msra.mxu0 0.0
  %786 = vmatpush.msra.mxu0 0.0
  %787 = vmatpush.msra.mxu0 0.0
  %788 = vmatpush.msra.mxu0 0.0
  %789 = vmatpush.msra.mxu0 0.0
  %790 = vmatpush.msra.mxu0 0.0
  %791 = vmatpush.msra.mxu0 0.0
  %792 = vmatpush.msra.mxu0 %v33
  %793 = vmatpush.msra.mxu0 %v32
  %794 = vmatpush.msra.mxu0 %v31
  %795 = vmatpush.msra.mxu0 %v30
  %796 = vmatmul.f32.gmra.mxu0 %v778
  %v797 = vpop.f32.mrf.mxu0
  %v798 = vadd.f32 %v109, %v797
  %799 = vdwg.mxu0
  %s800 = scalar_lea.vmem %s5, 14
  %801 = vst [vmem:[%s800] sm:$0x3] %v798
  // Predicated region
  $region18: #{my_lstm_forward.1} parent=0 // pred_check
    _
  $region19: #{my_lstm_forward.1} parent=0 // pred_check_branch
    %803 = sbr.rel (0) target = $region21
  $region20: #{my_lstm_forward.1} parent=0 // pred_region
    _
  $region21: #{my_lstm_forward.1} parent=0 // pred_fallthru
    _
  // Predicated region
  $region22: #{my_lstm_forward.1} parent=0 // pred_check
    _
  $region23: #{my_lstm_forward.1} parent=0 // pred_check_branch
    %805 = sbr.rel (0) target = $region25
  $region24: #{my_lstm_forward.1} parent=0 // pred_region
    _
  $region25: #{my_lstm_forward.1} parent=0 // pred_fallthru
    _

</llo_original>
